<compile_context>
chip_gen: v7x
topology: tpu7x:2x2x1
jax: 0.10.0
libtpu: 0.0.40
codegen_flags: <defaults>
</compile_context>

<pallas_src>
import jax
import jax.numpy as jnp
from jax import lax
from jax.experimental import pallas as pl
from jax.experimental.pallas import tpu as pltpu


# ----------------------------------------------------------------------------
# Kernel
# ----------------------------------------------------------------------------
def _make_kernel(layers, C, has_bias):
    """layers x [1x1 Conv(C->C) (+bias) -> Tanh] on a (C, TN, HW) tile."""

    def body(x_ref, w_ref, b_ref, o_ref):
        # x_ref block: (C, TN, HW). Each xs[c] is a clean (TN, HW) slab:
        # full-sublane, lane-dense vregs.
        xs = [x_ref[c] for c in range(C)]

        for l in range(layers):
            # Hoist SMEM scalar reads out of the accumulation loops.
            w = [[w_ref[(l * C + o) * C + c] for c in range(C)]
                 for o in range(C)]
            if has_bias:
                b = [b_ref[l * C + o] for o in range(C)]

            ys = []
            for o in range(C):
                acc = w[o][0] * xs[0]
                for c in range(1, C):
                    acc = acc + w[o][c] * xs[c]
                if has_bias:
                    acc = acc + b[o]
                ys.append(jnp.tanh(acc))          # tanh -> single EUP slot
            xs = ys

        # Per-channel direct stores: straight full-lane vst, no relayout.
        for c in range(C):
            o_ref[c] = xs[c].astype(o_ref.dtype)

    if has_bias:
        def kernel(x_ref, w_ref, b_ref, o_ref):
            body(x_ref, w_ref, b_ref, o_ref)
    else:
        def kernel(x_ref, w_ref, o_ref):
            body(x_ref, w_ref, None, o_ref)
    return kernel


# ----------------------------------------------------------------------------
# Batch-tile selection
# ----------------------------------------------------------------------------
def _pick_batch_tile(N, C, HW, target_bytes=2 << 20):
    """Per-grid-step batch tile TN: multiple of 8 (or == N), ~target_bytes block."""
    if N <= 8:
        return N                                   # block dim == full dim: legal
    cap = max(8, target_bytes // (4 * C * HW))
    cap = min(cap, N)
    cap = max(8, (cap // 8) * 8)
    # Keep >= 4 grid steps when N allows (v7x: 2 cores share the grid; each
    # needs >= 2 steps for the DMA prefetch/writeback to overlap compute).
    if N // cap < 4:
        cap = max(8, ((N // 4) // 8) * 8)
    # Prefer a TN that divides N exactly (no partial last block).
    for tn in range(cap, 7, -8):
        if N % tn == 0:
            return tn
    return cap                                     # partial last block: masked


# ----------------------------------------------------------------------------
# Wrapper
# ----------------------------------------------------------------------------
def conv_transformer_forward(x, weights, biases=None):
    """x: (N, C, H, W) f32; weights: (layers, C, C); biases: (layers, C) or None."""
    N, C, H, W = x.shape
    layers = weights.shape[0]
    HW = H * W
    has_bias = biases is not None

    # Channel-major: sublane axis = batch, lane axis = H*W (lane dense).
    x_r = jnp.transpose(x.astype(jnp.float32), (1, 0, 2, 3)).reshape(C, N, HW)
    w_flat = weights.reshape(-1).astype(jnp.float32)

    TN = _pick_batch_tile(N, C, HW)
    grid = (pl.cdiv(N, TN),)

    kernel = _make_kernel(layers, C, has_bias)

    in_specs = [
        pl.BlockSpec((C, TN, HW), lambda n: (0, n, 0)),               # activations
        pl.BlockSpec(memory_space=pltpu.MemorySpace.SMEM),            # weights
    ]
    args = [x_r, w_flat]
    if has_bias:
        in_specs.append(pl.BlockSpec(memory_space=pltpu.MemorySpace.SMEM))
        args.append(biases.reshape(-1).astype(jnp.float32))

    # 2x double-buffered (in + out) blocks plus elementwise temporaries;
    # cap well under v7x's 64 MiB physical VMEM.
    block_bytes = 4 * C * TN * HW
    vmem_limit = int(min(48 << 20, max(4 << 20, 10 * block_bytes)))

    flops = N * layers * C * HW * (2 * C + (1 if has_bias else 0))
    transcendentals = N * layers * C * HW
    bytes_accessed = 4 * (2 * x_r.size + w_flat.size
                          + (layers * C if has_bias else 0))

    out = pl.pallas_call(
        kernel,
        out_shape=jax.ShapeDtypeStruct((C, N, HW), jnp.float32),
        grid_spec=pltpu.PrefetchScalarGridSpec(
            num_scalar_prefetch=0,
            grid=grid,
            in_specs=in_specs,
            out_specs=pl.BlockSpec((C, TN, HW), lambda n: (0, n, 0)),
        ),
        compiler_params=pltpu.CompilerParams(
            dimension_semantics=("parallel",),
            vmem_limit_bytes=vmem_limit,
        ),
        cost_estimate=pl.CostEstimate(
            flops=flops,
            transcendentals=transcendentals,
            bytes_accessed=bytes_accessed,
        ),
    )(*args)

    return jnp.transpose(out.reshape(C, N, H, W), (1, 0, 2, 3))


# ----------------------------------------------------------------------------
# Pure-JAX reference (mirrors PyTorch Conv2d(3,3,1,1) + Tanh per layer)
# ----------------------------------------------------------------------------
def forward_ref(x, weights, biases=None):
    layers = weights.shape[0]
    y = x
    for l in range(layers):
        w = weights[l][:, :, None, None]     # OIHW 1x1 kernel
        y = lax.conv_general_dilated(
            y, w, (1, 1), [(0, 0), (0, 0)],
            dimension_numbers=("NCHW", "OIHW", "NCHW"))
        if biases is not None:
            y = y + biases[l][None, :, None, None]
        y = jnp.tanh(y)
    return y


# ----------------------------------------------------------------------------
# Deterministic parameter init (mirrors ConvTransformer(layers, bias, tmat, bvec))
# ----------------------------------------------------------------------------
def init_conv_transformer_params(key, layers=1, bias=False, tmat=None, bvec=None):
    kw, kb = jax.random.split(key, 2)
    if tmat is not None:
        W = jnp.broadcast_to(jnp.asarray(tmat, jnp.float32), (layers, 3, 3))
    else:
        W = 0.5 * jax.random.normal(kw, (layers, 3, 3), jnp.float32)
    if bvec is not None:
        B = jnp.broadcast_to(jnp.asarray(bvec, jnp.float32), (layers, 3))
    elif bias:
        B = 0.1 * jax.random.normal(kb, (layers, 3), jnp.float32)
    else:
        B = None
    return W, B


# ----------------------------------------------------------------------------
if __name__ == "__main__":
    key = jax.random.PRNGKey(0)
    kx, kp, kx2 = jax.random.split(key, 3)

    layers = 2
    N, C, H, W = 2, 3, 16, 16                # Conv2d(3, 3, ...) => C must be 3
    x = jax.random.normal(kx, (N, C, H, W), jnp.float32)

    # bias=True path (equivalent to providing bvec)
    Wmat, Bvec = init_conv_transformer_params(kp, layers=layers, bias=True)
    y = conv_transformer_forward(x, Wmat, Bvec)
    jax.block_until_ready(y)
    y_ref = forward_ref(x, Wmat, Bvec)
    assert y.shape == (N, C, H, W)
    assert jnp.allclose(y, y_ref, atol=1e-5, rtol=1e-4), "bias=True mismatch"

    # default bias=False path (specialized kernel, no bias arg)
    y2 = conv_transformer_forward(x, Wmat, None)
    jax.block_until_ready(y2)
    y2_ref = forward_ref(x, Wmat, None)
    assert jnp.allclose(y2, y2_ref, atol=1e-5, rtol=1e-4), "bias=False mismatch"

    # batch-tiled path (N > 8 -> TN multiple of 8, multi-step grid)
    N2 = 16
    x2 = jax.random.normal(kx2, (N2, C, H, W), jnp.float32)
    y3 = conv_transformer_forward(x2, Wmat, Bvec)
    jax.block_until_ready(y3)
    y3_ref = forward_ref(x2, Wmat, Bvec)
    assert jnp.allclose(y3, y3_ref, atol=1e-5, rtol=1e-4), "batch-tiled mismatch"

    print("KERNEL_OK")
</pallas_src>

<mosaic_0001>
module attributes {stable_mosaic.version = 11 : i64} {
  func.func @kernel(%arg0: i32, %arg1: memref<3x2x256xf32, #tpu.memory_space<vmem>>, %arg2: memref<18xf32, #tpu.memory_space<smem>>, %arg3: memref<6xf32, #tpu.memory_space<smem>>, %arg4: memref<3x2x256xf32, #tpu.memory_space<vmem>>) attributes {dimension_semantics = [#tpu.dimension_semantics<parallel>], iteration_bounds = array<i64: 1>, scalar_prefetch = 0 : i64, scratch_operands = 0 : i64, tpu.core_type = #tpu.core_type<tc>, window_params = [{transform_indices = @transform_0, window_bounds = array<i64: 3, 2, 256>}, {transform_indices = @transform_1, window_bounds = array<i64: 18>}, {transform_indices = @transform_2, window_bounds = array<i64: 6>}, {transform_indices = @transform_3, window_bounds = array<i64: 3, 2, 256>}]} {
    %c0 = arith.constant 0 : index
    %c0_0 = arith.constant 0 : index
    %c0_1 = arith.constant 0 : index
    %0 = vector.load %arg1[%c0, %c0_0, %c0_1] : memref<3x2x256xf32, #tpu.memory_space<vmem>>, vector<1x2x256xf32>
    %1 = vector.shape_cast %0 : vector<1x2x256xf32> to vector<2x256xf32>
    %c1 = arith.constant 1 : index
    %c0_2 = arith.constant 0 : index
    %c0_3 = arith.constant 0 : index
    %2 = vector.load %arg1[%c1, %c0_2, %c0_3] : memref<3x2x256xf32, #tpu.memory_space<vmem>>, vector<1x2x256xf32>
    %3 = vector.shape_cast %2 : vector<1x2x256xf32> to vector<2x256xf32>
    %c2 = arith.constant 2 : index
    %c0_4 = arith.constant 0 : index
    %c0_5 = arith.constant 0 : index
    %4 = vector.load %arg1[%c2, %c0_4, %c0_5] : memref<3x2x256xf32, #tpu.memory_space<vmem>>, vector<1x2x256xf32>
    %5 = vector.shape_cast %4 : vector<1x2x256xf32> to vector<2x256xf32>
    %c0_6 = arith.constant 0 : index
    %6 = memref.load %arg2[%c0_6] : memref<18xf32, #tpu.memory_space<smem>>
    %c1_7 = arith.constant 1 : index
    %7 = memref.load %arg2[%c1_7] : memref<18xf32, #tpu.memory_space<smem>>
    %c2_8 = arith.constant 2 : index
    %8 = memref.load %arg2[%c2_8] : memref<18xf32, #tpu.memory_space<smem>>
    %c3 = arith.constant 3 : index
    %9 = memref.load %arg2[%c3] : memref<18xf32, #tpu.memory_space<smem>>
    %c4 = arith.constant 4 : index
    %10 = memref.load %arg2[%c4] : memref<18xf32, #tpu.memory_space<smem>>
    %c5 = arith.constant 5 : index
    %11 = memref.load %arg2[%c5] : memref<18xf32, #tpu.memory_space<smem>>
    %c6 = arith.constant 6 : index
    %12 = memref.load %arg2[%c6] : memref<18xf32, #tpu.memory_space<smem>>
    %c7 = arith.constant 7 : index
    %13 = memref.load %arg2[%c7] : memref<18xf32, #tpu.memory_space<smem>>
    %c8 = arith.constant 8 : index
    %14 = memref.load %arg2[%c8] : memref<18xf32, #tpu.memory_space<smem>>
    %c0_9 = arith.constant 0 : index
    %15 = memref.load %arg3[%c0_9] : memref<6xf32, #tpu.memory_space<smem>>
    %c1_10 = arith.constant 1 : index
    %16 = memref.load %arg3[%c1_10] : memref<6xf32, #tpu.memory_space<smem>>
    %c2_11 = arith.constant 2 : index
    %17 = memref.load %arg3[%c2_11] : memref<6xf32, #tpu.memory_space<smem>>
    %18 = vector.broadcast %6 : f32 to vector<2x256xf32>
    %19 = arith.mulf %18, %1 : vector<2x256xf32>
    %20 = vector.broadcast %7 : f32 to vector<2x256xf32>
    %21 = arith.mulf %20, %3 : vector<2x256xf32>
    %22 = arith.addf %19, %21 : vector<2x256xf32>
    %23 = vector.broadcast %8 : f32 to vector<2x256xf32>
    %24 = arith.mulf %23, %5 : vector<2x256xf32>
    %25 = arith.addf %22, %24 : vector<2x256xf32>
    %26 = vector.broadcast %15 : f32 to vector<2x256xf32>
    %27 = arith.addf %25, %26 : vector<2x256xf32>
    %28 = math.tanh %27 : vector<2x256xf32>
    %29 = vector.broadcast %9 : f32 to vector<2x256xf32>
    %30 = arith.mulf %29, %1 : vector<2x256xf32>
    %31 = vector.broadcast %10 : f32 to vector<2x256xf32>
    %32 = arith.mulf %31, %3 : vector<2x256xf32>
    %33 = arith.addf %30, %32 : vector<2x256xf32>
    %34 = vector.broadcast %11 : f32 to vector<2x256xf32>
    %35 = arith.mulf %34, %5 : vector<2x256xf32>
    %36 = arith.addf %33, %35 : vector<2x256xf32>
    %37 = vector.broadcast %16 : f32 to vector<2x256xf32>
    %38 = arith.addf %36, %37 : vector<2x256xf32>
    %39 = math.tanh %38 : vector<2x256xf32>
    %40 = vector.broadcast %12 : f32 to vector<2x256xf32>
    %41 = arith.mulf %40, %1 : vector<2x256xf32>
    %42 = vector.broadcast %13 : f32 to vector<2x256xf32>
    %43 = arith.mulf %42, %3 : vector<2x256xf32>
    %44 = arith.addf %41, %43 : vector<2x256xf32>
    %45 = vector.broadcast %14 : f32 to vector<2x256xf32>
    %46 = arith.mulf %45, %5 : vector<2x256xf32>
    %47 = arith.addf %44, %46 : vector<2x256xf32>
    %48 = vector.broadcast %17 : f32 to vector<2x256xf32>
    %49 = arith.addf %47, %48 : vector<2x256xf32>
    %50 = math.tanh %49 : vector<2x256xf32>
    %c9 = arith.constant 9 : index
    %51 = memref.load %arg2[%c9] : memref<18xf32, #tpu.memory_space<smem>>
    %c10 = arith.constant 10 : index
    %52 = memref.load %arg2[%c10] : memref<18xf32, #tpu.memory_space<smem>>
    %c11 = arith.constant 11 : index
    %53 = memref.load %arg2[%c11] : memref<18xf32, #tpu.memory_space<smem>>
    %c12 = arith.constant 12 : index
    %54 = memref.load %arg2[%c12] : memref<18xf32, #tpu.memory_space<smem>>
    %c13 = arith.constant 13 : index
    %55 = memref.load %arg2[%c13] : memref<18xf32, #tpu.memory_space<smem>>
    %c14 = arith.constant 14 : index
    %56 = memref.load %arg2[%c14] : memref<18xf32, #tpu.memory_space<smem>>
    %c15 = arith.constant 15 : index
    %57 = memref.load %arg2[%c15] : memref<18xf32, #tpu.memory_space<smem>>
    %c16 = arith.constant 16 : index
    %58 = memref.load %arg2[%c16] : memref<18xf32, #tpu.memory_space<smem>>
    %c17 = arith.constant 17 : index
    %59 = memref.load %arg2[%c17] : memref<18xf32, #tpu.memory_space<smem>>
    %c3_12 = arith.constant 3 : index
    %60 = memref.load %arg3[%c3_12] : memref<6xf32, #tpu.memory_space<smem>>
    %c4_13 = arith.constant 4 : index
    %61 = memref.load %arg3[%c4_13] : memref<6xf32, #tpu.memory_space<smem>>
    %c5_14 = arith.constant 5 : index
    %62 = memref.load %arg3[%c5_14] : memref<6xf32, #tpu.memory_space<smem>>
    %63 = vector.broadcast %51 : f32 to vector<2x256xf32>
    %64 = arith.mulf %63, %28 : vector<2x256xf32>
    %65 = vector.broadcast %52 : f32 to vector<2x256xf32>
    %66 = arith.mulf %65, %39 : vector<2x256xf32>
    %67 = arith.addf %64, %66 : vector<2x256xf32>
    %68 = vector.broadcast %53 : f32 to vector<2x256xf32>
    %69 = arith.mulf %68, %50 : vector<2x256xf32>
    %70 = arith.addf %67, %69 : vector<2x256xf32>
    %71 = vector.broadcast %60 : f32 to vector<2x256xf32>
    %72 = arith.addf %70, %71 : vector<2x256xf32>
    %73 = math.tanh %72 : vector<2x256xf32>
    %74 = vector.broadcast %54 : f32 to vector<2x256xf32>
    %75 = arith.mulf %74, %28 : vector<2x256xf32>
    %76 = vector.broadcast %55 : f32 to vector<2x256xf32>
    %77 = arith.mulf %76, %39 : vector<2x256xf32>
    %78 = arith.addf %75, %77 : vector<2x256xf32>
    %79 = vector.broadcast %56 : f32 to vector<2x256xf32>
    %80 = arith.mulf %79, %50 : vector<2x256xf32>
    %81 = arith.addf %78, %80 : vector<2x256xf32>
    %82 = vector.broadcast %61 : f32 to vector<2x256xf32>
    %83 = arith.addf %81, %82 : vector<2x256xf32>
    %84 = math.tanh %83 : vector<2x256xf32>
    %85 = vector.broadcast %57 : f32 to vector<2x256xf32>
    %86 = arith.mulf %85, %28 : vector<2x256xf32>
    %87 = vector.broadcast %58 : f32 to vector<2x256xf32>
    %88 = arith.mulf %87, %39 : vector<2x256xf32>
    %89 = arith.addf %86, %88 : vector<2x256xf32>
    %90 = vector.broadcast %59 : f32 to vector<2x256xf32>
    %91 = arith.mulf %90, %50 : vector<2x256xf32>
    %92 = arith.addf %89, %91 : vector<2x256xf32>
    %93 = vector.broadcast %62 : f32 to vector<2x256xf32>
    %94 = arith.addf %92, %93 : vector<2x256xf32>
    %95 = math.tanh %94 : vector<2x256xf32>
    %c0_15 = arith.constant 0 : index
    %c0_16 = arith.constant 0 : index
    %c0_17 = arith.constant 0 : index
    %96 = vector.load %arg4[%c0_15, %c0_16, %c0_17] : memref<3x2x256xf32, #tpu.memory_space<vmem>>, vector<1x2x256xf32>
    %97 = vector.shape_cast %96 : vector<1x2x256xf32> to vector<2x256xf32>
    %98 = vector.shape_cast %73 : vector<2x256xf32> to vector<1x2x256xf32>
    tpu.vector_store %arg4[%c0_15, %c0_16, %c0_17], %98 {strides = array<i32>} : memref<3x2x256xf32, #tpu.memory_space<vmem>>, vector<1x2x256xf32>,
    %c1_18 = arith.constant 1 : index
    %c0_19 = arith.constant 0 : index
    %c0_20 = arith.constant 0 : index
    %99 = vector.load %arg4[%c1_18, %c0_19, %c0_20] : memref<3x2x256xf32, #tpu.memory_space<vmem>>, vector<1x2x256xf32>
    %100 = vector.shape_cast %99 : vector<1x2x256xf32> to vector<2x256xf32>
    %101 = vector.shape_cast %84 : vector<2x256xf32> to vector<1x2x256xf32>
    tpu.vector_store %arg4[%c1_18, %c0_19, %c0_20], %101 {strides = array<i32>} : memref<3x2x256xf32, #tpu.memory_space<vmem>>, vector<1x2x256xf32>,
    %c2_21 = arith.constant 2 : index
    %c0_22 = arith.constant 0 : index
    %c0_23 = arith.constant 0 : index
    %102 = vector.load %arg4[%c2_21, %c0_22, %c0_23] : memref<3x2x256xf32, #tpu.memory_space<vmem>>, vector<1x2x256xf32>
    %103 = vector.shape_cast %102 : vector<1x2x256xf32> to vector<2x256xf32>
    %104 = vector.shape_cast %95 : vector<2x256xf32> to vector<1x2x256xf32>
    tpu.vector_store %arg4[%c2_21, %c0_22, %c0_23], %104 {strides = array<i32>} : memref<3x2x256xf32, #tpu.memory_space<vmem>>, vector<1x2x256xf32>,
    return
  }
  func.func @transform_0(%arg0: i32) -> (i32, i32, i32) {
    %c0_i32 = arith.constant 0 : i32
    %c0_i32_0 = arith.constant 0 : i32
    %c0_i32_1 = arith.constant 0 : i32
    return %c0_i32, %arg0, %c0_i32_0 : i32, i32, i32
  }
  func.func @transform_1(%arg0: i32) -> i32 {
    %c0_i32 = arith.constant 0 : i32
    %c0_i32_0 = arith.constant 0 : i32
    return %c0_i32 : i32
  }
  func.func @transform_2(%arg0: i32) -> i32 {
    %c0_i32 = arith.constant 0 : i32
    %c0_i32_0 = arith.constant 0 : i32
    return %c0_i32 : i32
  }
  func.func @transform_3(%arg0: i32) -> (i32, i32, i32) {
    %c0_i32 = arith.constant 0 : i32
    %c0_i32_0 = arith.constant 0 : i32
    %c0_i32_1 = arith.constant 0 : i32
    return %c0_i32, %arg0, %c0_i32_0 : i32, i32, i32
  }
}

</mosaic_0001>

<llo_original>
// kernel: tpu_custom_call.1
$region0: #{tpu_custom_call.1}
  #allocation0 [shape = 'u32[]', space=smem, size = 0x4, offset = 0x4, fixed_abs, tag = 'smem constant byte address 0x4 - core index']
  #allocation1 [shape = 'u32[144,128]{1,0:T(1,128)}', space=vmem, size = 0x12000, scoped, tag = 'internal scratch']
  %s0 = inlined_call_operand.hbm [shape: f32[3,2,256], index: 0, kind: input, shape index: {}]
  %s1 = inlined_call_operand.vmem [shape: f32[18], index: 1, kind: input, shape index: {}]
  %s2 = inlined_call_operand.vmem [shape: f32[6], index: 2, kind: input, shape index: {}]
  %s3 = inlined_call_operand.hbm [shape: f32[3,2,256], index: 3, kind: output, shape index: {}]
  %s4 = sld [smem:[#allocation0]]
  $region34: #{tpu_custom_call.1} parent=0
    _
  %s6 = ssub.s32 1, %s4
  %s7 = scalar_select 0, %s6, %s4
  $region1: #{tpu_custom_call.1} parent=0
    #allocation2 [shape = 'u8[6144]{0}', space=vmem, size = 0x1800, scoped, tag = 'input window, operand 0, single buffered']
    #allocation3 [shape = 's32[1]{0}', space=sflag, size = 0x4, scoped, tag = 'scoped memory for tpu_custom_call.1']
    #allocation4 [shape = 's32[1]{0}', space=sflag, size = 0x4, scoped, tag = 'scoped memory for tpu_custom_call.1']
    #allocation5 [shape = 's32[1]{0}', space=sflag, size = 0x4, scoped, tag = 'scoped memory for tpu_custom_call.1']
    #allocation6 [shape = 'u8[512]{0}', space=smem, size = 0x200, scoped, tag = 'input window, operand 1, single buffered']
    #allocation7 [shape = 'u8[512]{0}', space=smem, size = 0x200, scoped, tag = 'input window, operand 2, single buffered']
    #allocation8 [shape = 's32[1]{0}', space=sflag, size = 0x4, scoped, tag = 'scoped memory for tpu_custom_call.1']
    #allocation9 [shape = 'u8[6144]{0}', space=vmem, size = 0x1800, scoped, tag = 'output window, operand 0, single buffered']
    %8 = vsyncpa [#allocation3], 0
    %9 = vsyncpa [#allocation5], 0
    %10 = vsyncpa [#allocation8], 0
    %11 = vsyncpa [#allocation4], 0
    // Predicated region
    $region2: #{tpu_custom_call.1} parent=1 // pred_check
      _
    $region3: #{tpu_custom_call.1} parent=1 // pred_check_branch
      %13 = sbr.rel (0) target = $region5
    $region4: #{tpu_custom_call.1} parent=1 // pred_region
      %s15 = ssub.s32 192, 192
      %16 = vsyncadd [#allocation3], %s15
      %s17 = sshll.u32 [#allocation2], 4
      %s18 = int_to_ptr.vmem [resolvable:$true] %s17
      %23 = dma.hbm_to_vmem [thread:$0]  %s0, 192, %s18, [#allocation3], 64, 64, 4
    $region5: #{tpu_custom_call.1} parent=1 // pred_fallthru
      _
    // Predicated region
    $region6: #{tpu_custom_call.1} parent=1 // pred_check
      _
    $region7: #{tpu_custom_call.1} parent=1 // pred_check_branch
      %25 = sbr.rel (0) target = $region9
    $region8: #{tpu_custom_call.1} parent=1 // pred_region
      %s27 = ssub.s32 16, 16
      %28 = vsyncadd [#allocation5], %s27
      %s30 = sshll.u32 %s1, 4
      %s31 = int_to_ptr.vmem [resolvable:$true] %s30
      %33 = dma.vmem_to_smem %s31, 16, [#allocation6], [#allocation5]
    $region9: #{tpu_custom_call.1} parent=1 // pred_fallthru
      _
    // Predicated region
    $region10: #{tpu_custom_call.1} parent=1 // pred_check
      _
    $region11: #{tpu_custom_call.1} parent=1 // pred_check_branch
      %35 = sbr.rel (0) target = $region13
    $region12: #{tpu_custom_call.1} parent=1 // pred_region
      %s37 = ssub.s32 16, 16
      %38 = vsyncadd [#allocation8], %s37
      %s40 = sshll.u32 %s2, 4
      %s41 = int_to_ptr.vmem [resolvable:$true] %s40
      %43 = dma.vmem_to_smem %s41, 16, [#allocation7], [#allocation8]
    $region13: #{tpu_custom_call.1} parent=1 // pred_fallthru
      _
    // Predicated region
    $region14: #{tpu_custom_call.1} parent=1 // pred_check
      _
    $region15: #{tpu_custom_call.1} parent=1 // pred_check_branch
      %45 = sbr.rel (0) target = $region17
    $region16: #{tpu_custom_call.1} parent=1 // pred_region
      %46 = dma.done [#allocation3], 192
    $region17: #{tpu_custom_call.1} parent=1 // pred_fallthru
      _
    // Predicated region
    $region18: #{tpu_custom_call.1} parent=1 // pred_check
      _
    $region19: #{tpu_custom_call.1} parent=1 // pred_check_branch
      %48 = sbr.rel (0) target = $region21
    $region20: #{tpu_custom_call.1} parent=1 // pred_region
      %49 = dma.done [#allocation5], 16
    $region21: #{tpu_custom_call.1} parent=1 // pred_fallthru
      _
    // Predicated region
    $region22: #{tpu_custom_call.1} parent=1 // pred_check
      _
    $region23: #{tpu_custom_call.1} parent=1 // pred_check_branch
      %51 = sbr.rel (0) target = $region25
    $region24: #{tpu_custom_call.1} parent=1 // pred_region
      %52 = dma.done [#allocation8], 16
    $region25: #{tpu_custom_call.1} parent=1 // pred_fallthru
      _
    %53 = sfence
    %v54 = vld [vmem:[#allocation2] sm:$0xf]
    %s55 = scalar_lea.vmem [#allocation2], 4
    %v56 = vld [vmem:[%s55] sm:$0xf]
    %s57 = scalar_lea.vmem [#allocation2], 8
    %v58 = vld [vmem:[%s57] sm:$0xf]
    %s59 = sld [smem:[#allocation6]]
    %s60 = sld [smem:[#allocation6 + $0x1]]
    %s61 = sld [smem:[#allocation6 + $0x2]]
    %s62 = sld [smem:[#allocation6 + $0x3]]
    %s63 = sld [smem:[#allocation6 + $0x4]]
    %s64 = sld [smem:[#allocation6 + $0x5]]
    %s65 = sld [smem:[#allocation6 + $0x6]]
    %s66 = sld [smem:[#allocation6 + $0x7]]
    %s67 = sld [smem:[#allocation6 + $0x8]]
    %s68 = sld [smem:[#allocation7]]
    %s69 = sld [smem:[#allocation7 + $0x1]]
    %s70 = sld [smem:[#allocation7 + $0x2]]
    %v71 = vstv %s59
    %v72 = vmul.f32 %v71, %v54
    %v73 = vstv %s60
    %v74 = vmul.f32 %v73, %v56
    %v75 = vadd.f32 %v72, %v74
    %v76 = vstv %s61
    %v77 = vmul.f32 %v76, %v58
    %v78 = vadd.f32 %v75, %v77
    %v79 = vstv %s68
    %v80 = vadd.f32 %v78, %v79
    %v81 = vtanh.pop %v80
    %v82 = vstv %s62
    %v83 = vmul.f32 %v82, %v54
    %v84 = vstv %s63
    %v85 = vmul.f32 %v84, %v56
    %v86 = vadd.f32 %v83, %v85
    %v87 = vstv %s64
    %v88 = vmul.f32 %v87, %v58
    %v89 = vadd.f32 %v86, %v88
    %v90 = vstv %s69
    %v91 = vadd.f32 %v89, %v90
    %v92 = vtanh.pop %v91
    %v93 = vstv %s65
    %v94 = vmul.f32 %v93, %v54
    %v95 = vstv %s66
    %v96 = vmul.f32 %v95, %v56
    %v97 = vadd.f32 %v94, %v96
    %v98 = vstv %s67
    %v99 = vmul.f32 %v98, %v58
    %v100 = vadd.f32 %v97, %v99
    %v101 = vstv %s70
    %v102 = vadd.f32 %v100, %v101
    %v103 = vtanh.pop %v102
    %s104 = sld [smem:[#allocation6 + $0x9]]
    %s105 = sld [smem:[#allocation6 + $0xa]]
    %s106 = sld [smem:[#allocation6 + $0xb]]
    %s107 = sld [smem:[#allocation6 + $0xc]]
    %s108 = sld [smem:[#allocation6 + $0xd]]
    %s109 = sld [smem:[#allocation6 + $0xe]]
    %s110 = sld [smem:[#allocation6 + $0xf]]
    %s111 = sld [smem:[#allocation6 + $0x10]]
    %s112 = sld [smem:[#allocation6 + $0x11]]
    %s113 = sld [smem:[#allocation7 + $0x3]]
    %s114 = sld [smem:[#allocation7 + $0x4]]
    %s115 = sld [smem:[#allocation7 + $0x5]]
    %v116 = vstv %s104
    %v117 = vmul.f32 %v116, %v81
    %v118 = vstv %s105
    %v119 = vmul.f32 %v118, %v92
    %v120 = vadd.f32 %v117, %v119
    %v121 = vstv %s106
    %v122 = vmul.f32 %v121, %v103
    %v123 = vadd.f32 %v120, %v122
    %v124 = vstv %s113
    %v125 = vadd.f32 %v123, %v124
    %v126 = vtanh.pop %v125
    %v127 = vstv %s107
    %v128 = vmul.f32 %v127, %v81
    %v129 = vstv %s108
    %v130 = vmul.f32 %v129, %v92
    %v131 = vadd.f32 %v128, %v130
    %v132 = vstv %s109
    %v133 = vmul.f32 %v132, %v103
    %v134 = vadd.f32 %v131, %v133
    %v135 = vstv %s114
    %v136 = vadd.f32 %v134, %v135
    %v137 = vtanh.pop %v136
    %v138 = vstv %s110
    %v139 = vmul.f32 %v138, %v81
    %v140 = vstv %s111
    %v141 = vmul.f32 %v140, %v92
    %v142 = vadd.f32 %v139, %v141
    %v143 = vstv %s112
    %v144 = vmul.f32 %v143, %v103
    %v145 = vadd.f32 %v142, %v144
    %v146 = vstv %s115
    %v147 = vadd.f32 %v145, %v146
    %v148 = vtanh.pop %v147
    %149 = vst [vmem:[#allocation9] sm:$0xf] %v126
    %s150 = scalar_lea.vmem [#allocation9], 4
    %151 = vst [vmem:[%s150] sm:$0xf] %v137
    %s152 = scalar_lea.vmem [#allocation9], 8
    %153 = vst [vmem:[%s152] sm:$0xf] %v148
    // Predicated region
    $region26: #{tpu_custom_call.1} parent=1 // pred_check
      _
    $region27: #{tpu_custom_call.1} parent=1 // pred_check_branch
      %155 = sbr.rel (0) target = $region29
    $region28: #{tpu_custom_call.1} parent=1 // pred_region
      %s157 = ssub.s32 192, 192
      %158 = vsyncadd [#allocation4], %s157
      %s159 = sshll.u32 [#allocation9], 4
      %s160 = int_to_ptr.vmem [resolvable:$true] %s159
      %165 = dma.vmem_to_hbm [thread:$0]  %s160, 192, %s3, [#allocation4], 64, 64, 4
    $region29: #{tpu_custom_call.1} parent=1 // pred_fallthru
      _
    // Predicated region
    $region30: #{tpu_custom_call.1} parent=1 // pred_check
      _
    $region31: #{tpu_custom_call.1} parent=1 // pred_check_branch
      %167 = sbr.rel (0) target = $region33
    $region32: #{tpu_custom_call.1} parent=1 // pred_region
      %168 = dma.done [#allocation4], 192
    $region33: #{tpu_custom_call.1} parent=1 // pred_fallthru
      _
    %169 = vsyncpa [#allocation3], 1
    %170 = vsyncpa [#allocation4], 1
    %171 = vsyncpa [#allocation5], 1
    %172 = vsyncpa [#allocation8], 1

</llo_original>
